<compile_context>
chip_gen: v6e
topology: v6e:2x2x1
jax: 0.10.0
libtpu: 0.0.40
codegen_flags: <defaults>
</compile_context>

<pallas_src>
import jax
import jax.numpy as jnp
from jax.experimental import pallas as pl
from jax.experimental.pallas import tpu as pltpu


def _round_up(x, m):
    return ((x + m - 1) // m) * m


def _round_down(x, m):
    return (x // m) * m


def _fk_kernel(p_ref, x_ref, o_ref):
    # p_ref: (R, 3) f32, columns = [softplus(H), b, tanh(a)] (hoisted in wrapper)
    # x_ref/o_ref: (R, TW) in X's native dtype; compute in f32 in-register.
    x = x_ref[...].astype(jnp.float32)
    xp = p_ref[:, 0:1] * x + p_ref[:, 1:2]
    o_ref[...] = (xp + p_ref[:, 2:3] * jnp.tanh(xp)).astype(o_ref.dtype)


def _fk_final_kernel(p_ref, x_ref, o_ref):
    # p_ref: (R, 2) f32, columns = [softplus(H), b]
    x = x_ref[...].astype(jnp.float32)
    xp = p_ref[:, 0:1] * x + p_ref[:, 1:2]
    o_ref[...] = jax.nn.sigmoid(xp).astype(o_ref.dtype)


# ~4 MiB / block: near HBM roofline on all generations and v7x-safe
# (2x(in+out) double-buffering stays well under 64 MiB VMEM per TensorCore).
# Could be raised to ~8-12 MiB on v6e only; do NOT port larger blocks to v7x.
_TARGET_BLOCK_BYTES = 4 * 1024 * 1024


def f_k_forward(X, H, b, a=None, is_final=False):
    """Pallas implementation of F_k.forward.

    X: (N, C, Hs, Ws) NCHW tensor (any float dtype; streamed natively).
    H, b, a: (1, C, 1, 1) parameters.
    """
    N, C, Hs, Ws = X.shape
    HW = Hs * Ws
    rows = N * C
    x_dtype = X.dtype
    itemsize = jnp.dtype(x_dtype).itemsize
    # Sublane granularity of the streamed tensor: 8 for f32, 16 for bf16.
    sublane = max(8, 32 // itemsize)

    # ---- per-channel params: hoist transcendentals, pack, replicate per row
    sp_h = jax.nn.softplus(H.reshape(C).astype(jnp.float32))
    b1 = b.reshape(C).astype(jnp.float32)
    if is_final:
        params_c = jnp.stack([sp_h, b1], axis=-1)              # (C, 2)
        kernel = _fk_final_kernel
        flops_per_elem = 2
    else:
        assert a is not None
        tanh_a = jnp.tanh(a.reshape(C).astype(jnp.float32))
        params_c = jnp.stack([sp_h, b1, tanh_a], axis=-1)      # (C, 3)
        kernel = _fk_kernel
        flops_per_elem = 5
    P = params_c.shape[-1]
    params = jnp.tile(params_c, (N, 1))                        # (rows, P)

    # ---- tiling: lane-dense column tile first, row tile from the byte budget
    tw_cap = max(128, _round_down(_TARGET_BLOCK_BYTES // (sublane * itemsize), 128))
    if HW <= tw_cap:
        TW = HW                     # full spatial axis (legal even if not %128)
    else:
        TW = tw_cap                 # multiple of 128; last column tile ragged

    r_budget = max(sublane, _round_down(_TARGET_BLOCK_BYTES // (TW * itemsize), sublane))
    R = r_budget if r_budget < rows else rows

    # v7x megacore: guarantee >=2 blocks along a parallel axis when possible,
    # so both TensorCores (and the full HBM bandwidth) are used.
    if pl.cdiv(rows, R) * pl.cdiv(HW, TW) < 2:
        if HW > 128 and TW > 128:
            TW = max(128, _round_up(pl.cdiv(HW, 2), 128))
        elif rows > sublane:
            R = max(sublane, _round_up(pl.cdiv(rows, 2), sublane))

    # Columns innermost -> the (R, P) param block index is constant across the
    # inner loop and is not re-fetched.
    grid = (pl.cdiv(rows, R), pl.cdiv(HW, TW))

    # X streams unpadded in its native dtype; ragged boundary blocks are
    # handled by Pallas (masked stores).  Only the tiny params array is padded
    # so ragged row blocks read defined values.
    x2 = X.reshape(rows, HW)
    rows_pad_p = grid[0] * R
    if rows_pad_p > rows:
        params = jnp.pad(params, ((0, rows_pad_p - rows), (0, 0)))

    param_spec = pl.BlockSpec((R, P), lambda r, t: (r, 0))
    x_spec = pl.BlockSpec((R, TW), lambda r, t: (r, t))
    o_spec = pl.BlockSpec((R, TW), lambda r, t: (r, t))

    # Double-buffered input + output blocks (+ tiny param buffers) must fit
    # the scoped VMEM budget; raise it past the small v5e default, keep it
    # well under v7x's 64 MiB physical VMEM.  (If _TARGET_BLOCK_BYTES is ever
    # raised, raise this clamp with it.)
    block_bytes = R * TW * itemsize
    vmem_limit = int(min(max(4 * block_bytes + (2 << 20), 16 << 20), 48 << 20))

    elems = rows * HW
    cost = pl.CostEstimate(
        flops=flops_per_elem * elems,
        transcendentals=elems,
        bytes_accessed=2 * elems * itemsize + int(params.size) * 4,
    )

    out2 = pl.pallas_call(
        kernel,
        out_shape=jax.ShapeDtypeStruct((rows, HW), x_dtype),
        grid_spec=pltpu.PrefetchScalarGridSpec(
            num_scalar_prefetch=0,
            grid=grid,
            in_specs=[param_spec, x_spec],
            out_specs=o_spec,
        ),
        compiler_params=pltpu.CompilerParams(
            dimension_semantics=("parallel", "parallel"),
            vmem_limit_bytes=vmem_limit,
        ),
        cost_estimate=cost,
    )(params, x2)

    return out2.reshape(N, C, Hs, Ws)


def f_k_reference(X, H, b, a=None, is_final=False):
    """Pure-JAX reference matching the PyTorch module."""
    sp_h = jax.nn.softplus(H)
    if is_final:
        return jax.nn.sigmoid(sp_h * X + b)
    Xp = sp_h * X + b
    return Xp + jnp.tanh(a) * jnp.tanh(Xp)


if __name__ == "__main__":
    key = jax.random.PRNGKey(0)
    k_x, k_h, k_b, k_a, k_x2, k_x3 = jax.random.split(key, 6)

    N, C, Hs, Ws = 2, 4, 16, 16
    X = jax.random.normal(k_x, (N, C, Hs, Ws), dtype=jnp.float32)

    # Deterministic "normal(0, 0.01)" parameter init, same shapes as nn.Parameter.
    H_param = 0.01 * jax.random.normal(k_h, (1, C, 1, 1), dtype=jnp.float32)
    b_param = 0.01 * jax.random.normal(k_b, (1, C, 1, 1), dtype=jnp.float32)
    a_param = 0.01 * jax.random.normal(k_a, (1, C, 1, 1), dtype=jnp.float32)

    # isFinal=False path (f32)
    out = f_k_forward(X, H_param, b_param, a_param, is_final=False)
    out = jax.block_until_ready(out)
    ref = f_k_reference(X, H_param, b_param, a_param, is_final=False)
    assert out.shape == (N, C, Hs, Ws) and out.dtype == X.dtype
    assert jnp.allclose(out, ref, atol=1e-5, rtol=1e-5)

    # isFinal=True path (f32)
    out_f = f_k_forward(X, H_param, b_param, is_final=True)
    out_f = jax.block_until_ready(out_f)
    ref_f = f_k_reference(X, H_param, b_param, is_final=True)
    assert out_f.shape == (N, C, Hs, Ws)
    assert jnp.allclose(out_f, ref_f, atol=1e-5, rtol=1e-5)

    # Awkward (non-8/128-aligned) spatial shape: exercises the ragged-block
    # path (no host pad / slice anymore).
    X_odd = jax.random.normal(k_x2, (N, C, 10, 10), dtype=jnp.float32)
    out_o = f_k_forward(X_odd, H_param, b_param, a_param, is_final=False)
    out_o = jax.block_until_ready(out_o)
    ref_o = f_k_reference(X_odd, H_param, b_param, a_param, is_final=False)
    assert out_o.shape == (N, C, 10, 10)
    assert jnp.allclose(out_o, ref_o, atol=1e-5, rtol=1e-5)

    # Native-dtype streaming path (bf16 in HBM, f32 compute in-register).
    Cb = 8
    Xb = jax.random.normal(k_x3, (2, Cb, 16, 16), dtype=jnp.bfloat16)
    Hb = 0.01 * jax.random.normal(k_h, (1, Cb, 1, 1), dtype=jnp.float32)
    bb = 0.01 * jax.random.normal(k_b, (1, Cb, 1, 1), dtype=jnp.float32)
    ab = 0.01 * jax.random.normal(k_a, (1, Cb, 1, 1), dtype=jnp.float32)
    out_b = f_k_forward(Xb, Hb, bb, ab, is_final=False)
    out_b = jax.block_until_ready(out_b)
    ref_b = f_k_reference(Xb.astype(jnp.float32), Hb, bb, ab, is_final=False)
    assert out_b.shape == Xb.shape and out_b.dtype == jnp.bfloat16
    assert jnp.allclose(out_b.astype(jnp.float32), ref_b, atol=5e-2, rtol=2e-2)

    print("KERNEL_OK")
</pallas_src>

<mosaic_0001>
module attributes {stable_mosaic.version = 11 : i64} {
  func.func @_fk_kernel(%arg0: i32, %arg1: i32, %arg2: memref<8x3xf32, #tpu.memory_space<vmem>>, %arg3: memref<8x128xf32, #tpu.memory_space<vmem>>, %arg4: memref<8x128xf32, #tpu.memory_space<vmem>>) attributes {dimension_semantics = [#tpu.dimension_semantics<parallel>, #tpu.dimension_semantics<parallel>], iteration_bounds = array<i64: 1, 2>, scalar_prefetch = 0 : i64, scratch_operands = 0 : i64, tpu.core_type = #tpu.core_type<tc>, window_params = [{transform_indices = @transform_0, window_bounds = array<i64: 8, 3>}, {transform_indices = @transform_1, window_bounds = array<i64: 8, 128>}, {transform_indices = @transform_2, window_bounds = array<i64: 8, 128>}]} {
    %c0 = arith.constant 0 : index
    %c0_0 = arith.constant 0 : index
    %0 = vector.load %arg3[%c0, %c0_0] : memref<8x128xf32, #tpu.memory_space<vmem>>, vector<8x128xf32>
    %c0_1 = arith.constant 0 : index
    %c0_2 = arith.constant 0 : index
    %1 = vector.load %arg2[%c0_1, %c0_2] : memref<8x3xf32, #tpu.memory_space<vmem>>, vector<8x1xf32>
    %2 = vector.broadcast %1 : vector<8x1xf32> to vector<8x128xf32>
    %3 = arith.mulf %2, %0 : vector<8x128xf32>
    %c0_3 = arith.constant 0 : index
    %c1 = arith.constant 1 : index
    %4 = vector.load %arg2[%c0_3, %c1] : memref<8x3xf32, #tpu.memory_space<vmem>>, vector<8x1xf32>
    %5 = vector.broadcast %4 : vector<8x1xf32> to vector<8x128xf32>
    %6 = arith.addf %3, %5 : vector<8x128xf32>
    %c0_4 = arith.constant 0 : index
    %c2 = arith.constant 2 : index
    %7 = vector.load %arg2[%c0_4, %c2] : memref<8x3xf32, #tpu.memory_space<vmem>>, vector<8x1xf32>
    %8 = math.tanh %6 : vector<8x128xf32>
    %9 = vector.broadcast %7 : vector<8x1xf32> to vector<8x128xf32>
    %10 = arith.mulf %9, %8 : vector<8x128xf32>
    %11 = arith.addf %6, %10 : vector<8x128xf32>
    %c0_5 = arith.constant 0 : index
    %c0_6 = arith.constant 0 : index
    %12 = vector.load %arg4[%c0_5, %c0_6] : memref<8x128xf32, #tpu.memory_space<vmem>>, vector<8x128xf32>
    tpu.vector_store %arg4[%c0_5, %c0_6], %11 {strides = array<i32>} : memref<8x128xf32, #tpu.memory_space<vmem>>, vector<8x128xf32>,
    return
  }
  func.func @transform_0(%arg0: i32, %arg1: i32) -> (i32, i32) {
    %c0_i32 = arith.constant 0 : i32
    %c0_i32_0 = arith.constant 0 : i32
    return %arg0, %c0_i32 : i32, i32
  }
  func.func @transform_1(%arg0: i32, %arg1: i32) -> (i32, i32) {
    %c0_i32 = arith.constant 0 : i32
    return %arg0, %arg1 : i32, i32
  }
  func.func @transform_2(%arg0: i32, %arg1: i32) -> (i32, i32) {
    %c0_i32 = arith.constant 0 : i32
    return %arg0, %arg1 : i32, i32
  }
}

</mosaic_0001>

<llo_original>
// kernel: tpu_custom_call.1
$region0: #{tpu_custom_call.1}
  #allocation0 [shape = 'u32[]', space=smem, size = 0x4, offset = 0x4, fixed_abs, tag = 'smem constant byte address 0x4 - core index']
  #allocation1 [shape = 'u32[144,128]{1,0:T(1,128)}', space=vmem, size = 0x12000, scoped, tag = 'internal scratch']
  %s0 = inlined_call_operand.vmem [shape: f32[8,3], index: 0, kind: input, shape index: {}]
  %s1 = inlined_call_operand.hbm [shape: f32[8,256], index: 1, kind: input, shape index: {}]
  %s2 = inlined_call_operand.hbm [shape: f32[8,256], index: 2, kind: output, shape index: {}]
  %s3 = sld [smem:[#allocation0]]
  $region45: #{tpu_custom_call.1} parent=0
    _
  %s5 = ssub.s32 1, %s3
  %s6 = scalar_select 0, %s5, %s3
  $region1: #{tpu_custom_call.1} parent=0
    #allocation2 [shape = 'u8[8192]{0}', space=vmem, size = 0x2000, scoped, tag = 'input window, operand 1']
    #allocation3 [shape = 's32[2]{0}', space=sflag, size = 0x8, scoped, tag = 'scoped memory for tpu_custom_call.1']
    #allocation4 [shape = 's32[2]{0}', space=sflag, size = 0x8, scoped, tag = 'scoped memory for tpu_custom_call.1']
    #allocation5 [shape = 'u8[8192]{0}', space=vmem, size = 0x2000, scoped, tag = 'output window, operand 0']
    %7 = vsyncpa [#allocation3], 0
    %s8 = scalar_lea.sflag [#allocation3], 1
    %9 = vsyncpa %s8, 0
    %10 = vsyncpa [#allocation4], 0
    %s11 = scalar_lea.sflag [#allocation4], 1
    %12 = vsyncpa %s11, 0
    loop: start=0, step=1, limit=4
    $region2: #{tpu_custom_call.1} parent=1 // loop_pre_header
      _
    $region3: #{tpu_custom_call.1} parent=1 // loop_header
      %s14 = sphi 0, %s18
      %p15 = scmp.ge.s32.totalorder %s14, 4
      %s21 = sphi 0, %s33
      %s22 = sphi 0, %s29
      %s23 = sphi 0, %s21
      %s24 = sphi 0, %s22
      %s25 = sphi 0, %s23
      %s26 = sphi 0, %s24
      %s36 = sphi 0, %s38
      %s39 = sphi 0, %s36
      %s40 = sphi 0, %s39
      %s56 = sphi 0, %s40
      %s64 = sphi 0, %s66
      %s67 = sphi 0, %s64
      %s68 = sphi 0, %s67
      %s84 = sphi 0, %s68
      %s92 = sphi 0, %s94
      %s95 = sphi 0, %s92
      %s96 = sphi 0, %s95
      %s112 = sphi 0, %s96
    $region4: #{tpu_custom_call.1} parent=1 // loop_header_branch
      %17 = sbr.rel (%p15) target = $region8
    $region5: #{tpu_custom_call.1} parent=1 // loop_body
      %s19 = ssub.s32 %s14, 1
      %s20 = ssub.s32 %s14, 2
      %s27 = sadd.s32 1, %s22
      %p28 = scmp.ge.s32.totalorder %s27, 2
      %s29 = scalar_select %p28, 0, %s27
      %s30 = sadd.s32 1, %s21
      %s31 = scalar_select %p28, %s30, %s21
      %p32 = scmp.ge.s32.totalorder %s31, 1
      %s33 = scalar_select %p32, 0, %s31
      %s34 = ssub.s32 %s21, %s33
      %p35 = scmp.eq.s32.totalorder %s34, 0
      %s37 = sadd.s32 %s36, 1
      %s38 = scalar_select %p35, %s36, %s37
      %p41 = pneg %p35
      %p42 = scmp.eq.s32.totalorder %s14, 1
      %p43 = por %p41, %p42
      %p44 = scmp.ne.s32.totalorder %s36, %s39
      %p45 = scmp.eq.s32.totalorder %s14, 0
      %p46 = por %p44, %p45
      %p47 = scmp.ne.s32.totalorder %s36, %s39
      %p48 = scmp.eq.s32.totalorder %s19, 1
      %p49 = por %p47, %p48
      %p50 = scmp.ne.s32.totalorder %s39, %s40
      %p51 = scmp.eq.s32.totalorder %s19, 0
      %p52 = por %p50, %p51
      %p53 = scmp.ne.s32.totalorder %s39, %s40
      %p54 = scmp.eq.s32.totalorder %s20, 1
      %p55 = por %p53, %p54
      %p57 = scmp.ne.s32.totalorder %s40, %s56
      %p58 = scmp.eq.s32.totalorder %s20, 0
      %p59 = por %p57, %p58
      %s60 = ssub.s32 %s21, %s33
      %s61 = ssub.s32 %s22, %s29
      %s62 = sor.u32 %s60, %s61
      %p63 = scmp.eq.s32.totalorder %s62, 0
      %s65 = sadd.s32 %s64, 1
      %s66 = scalar_select %p63, %s64, %s65
      %p69 = pneg %p63
      %p70 = scmp.eq.s32.totalorder %s14, 1
      %p71 = por %p69, %p70
      %p72 = scmp.ne.s32.totalorder %s64, %s67
      %p73 = scmp.eq.s32.totalorder %s14, 0
      %p74 = por %p72, %p73
      %p75 = scmp.ne.s32.totalorder %s64, %s67
      %p76 = scmp.eq.s32.totalorder %s19, 1
      %p77 = por %p75, %p76
      %p78 = scmp.ne.s32.totalorder %s67, %s68
      %p79 = scmp.eq.s32.totalorder %s19, 0
      %p80 = por %p78, %p79
      %p81 = scmp.ne.s32.totalorder %s67, %s68
      %p82 = scmp.eq.s32.totalorder %s20, 1
      %p83 = por %p81, %p82
      %p85 = scmp.ne.s32.totalorder %s68, %s84
      %p86 = scmp.eq.s32.totalorder %s20, 0
      %p87 = por %p85, %p86
      %s88 = ssub.s32 %s21, %s33
      %s89 = ssub.s32 %s22, %s29
      %s90 = sor.u32 %s88, %s89
      %p91 = scmp.eq.s32.totalorder %s90, 0
      %s93 = sadd.s32 %s92, 1
      %s94 = scalar_select %p91, %s92, %s93
      %p97 = pneg %p91
      %p98 = scmp.eq.s32.totalorder %s14, 1
      %p99 = por %p97, %p98
      %p100 = scmp.ne.s32.totalorder %s92, %s95
      %p101 = scmp.eq.s32.totalorder %s14, 0
      %p102 = por %p100, %p101
      %p103 = scmp.ne.s32.totalorder %s92, %s95
      %p104 = scmp.eq.s32.totalorder %s19, 1
      %p105 = por %p103, %p104
      %p106 = scmp.ne.s32.totalorder %s95, %s96
      %p107 = scmp.eq.s32.totalorder %s19, 0
      %p108 = por %p106, %p107
      %p109 = scmp.ne.s32.totalorder %s95, %s96
      %p110 = scmp.eq.s32.totalorder %s20, 1
      %p111 = por %p109, %p110
      %p113 = scmp.ne.s32.totalorder %s96, %s112
      %p114 = scmp.eq.s32.totalorder %s20, 0
      %p115 = por %p113, %p114
      %p116 = scmp.le.s32.totalorder 1, %s14
      %p117 = scmp.lt.s32.totalorder %s14, 3
      %p118 = pnand %p116, %p117
      %p119 = pneg %p118
      // Predicated region
      $region9: #{tpu_custom_call.1} parent=5 // pred_check
        _
      $region10: #{tpu_custom_call.1} parent=5 // pred_check_branch
        %121 = sbr.rel (%p118) target = $region12
      $region11: #{tpu_custom_call.1} parent=5 // pred_region
        %s122 = ssub.s32 %s14, 1
        // Predicated region
        $region13: #{tpu_custom_call.1} parent=11 // pred_check
          %p123 = pneg %p52
        $region14: #{tpu_custom_call.1} parent=11 // pred_check_branch
          %125 = sbr.rel (%p123) target = $region16
        $region15: #{tpu_custom_call.1} parent=11 // pred_region
          %p126 = scmp.lt.s32.totalorder %s23, 0
          %s127 = scalar_select %p126, %s23, 0
          %s128 = smul.addr %s127, 8
          %s129 = scalar_lea.vmem %s0, %s128
        $region16: #{tpu_custom_call.1} parent=11 // pred_fallthru
          _
      $region12: #{tpu_custom_call.1} parent=5 // pred_fallthru
        _
      %p130 = scmp.lt.s32.totalorder %s14, 2
      // Predicated region
      $region17: #{tpu_custom_call.1} parent=5 // pred_check
        %p131 = pneg %p130
      $region18: #{tpu_custom_call.1} parent=5 // pred_check_branch
        %133 = sbr.rel (%p131) target = $region20
      $region19: #{tpu_custom_call.1} parent=5 // pred_region
        // Predicated region
        $region21: #{tpu_custom_call.1} parent=19 // pred_check
          %p134 = pneg %p74
        $region22: #{tpu_custom_call.1} parent=19 // pred_check_branch
          %136 = sbr.rel (%p134) target = $region24
        $region23: #{tpu_custom_call.1} parent=19 // pred_region
          %s137 = sand.u32 %s64, 1
          %s138 = scalar_lea.sflag [#allocation3], %s137
          %s139 = sand.u32 %s64, 1
          %s140 = smul.addr %s139, 8
          %s141 = scalar_lea.vmem [#allocation2], %s140
          %s143 = ssub.s32 128, 128
          %144 = vsyncadd %s138, %s143
          %s145 = smul.addr %s21, 2
          %s146 = sadd.s32 %s22, %s145
          %s147 = smul.addr %s146, 128
          %s148 = scalar_lea.hbm %s1, %s147
          %s150 = sshll.u32 %s141, 4
          %s151 = int_to_ptr.vmem [resolvable:$true] %s150
          %153 = dma.hbm_to_vmem [thread:$0]  %s148, 128, %s151, %s138
        $region24: #{tpu_custom_call.1} parent=19 // pred_fallthru
          _
      $region20: #{tpu_custom_call.1} parent=5 // pred_fallthru
        _
      %p154 = scmp.le.s32.totalorder 1, %s14
      %p155 = scmp.lt.s32.totalorder %s14, 3
      %p156 = pnand %p154, %p155
      %p157 = pneg %p156
      // Predicated region
      $region25: #{tpu_custom_call.1} parent=5 // pred_check
        _
      $region26: #{tpu_custom_call.1} parent=5 // pred_check_branch
        %159 = sbr.rel (%p156) target = $region28
      $region27: #{tpu_custom_call.1} parent=5 // pred_region
        %s160 = ssub.s32 %s14, 1
        %s161 = sand.u32 %s67, 1
        %s162 = scalar_lea.sflag [#allocation3], %s161
        %s163 = sand.u32 %s67, 1
        %s164 = smul.addr %s163, 8
        %s165 = scalar_lea.vmem [#allocation2], %s164
        // Predicated region
        $region29: #{tpu_custom_call.1} parent=27 // pred_check
          %p166 = pneg %p80
        $region30: #{tpu_custom_call.1} parent=27 // pred_check_branch
          %168 = sbr.rel (%p166) target = $region32
        $region31: #{tpu_custom_call.1} parent=27 // pred_region
          %169 = dma.done %s162, 128
        $region32: #{tpu_custom_call.1} parent=27 // pred_fallthru
          _
        %p170 = scmp.lt.s32.totalorder %s23, 0
        %s171 = scalar_select %p170, %s23, 0
        %s172 = smul.addr %s171, 8
        %s173 = scalar_lea.vmem %s0, %s172
        %p174 = pneg %p52
        %p175 = pneg %p49
        %s176 = sand.u32 %s67, 1
        %s177 = scalar_lea.sflag [#allocation3], %s176
        %s178 = sand.u32 %s67, 1
        %s179 = smul.addr %s178, 8
        %s180 = scalar_lea.vmem [#allocation2], %s179
        %p181 = pneg %p80
        %p182 = pneg %p77
        %p183 = pneg %p108
        %p184 = pneg %p105
        %s185 = sand.u32 %s95, 1
        %s186 = scalar_lea.sflag [#allocation4], %s185
        %s187 = sand.u32 %s95, 1
        %s188 = smul.addr %s187, 8
        %s189 = scalar_lea.vmem [#allocation5], %s188
        %p190 = scmp.lt.s32.totalorder %s23, 0
        %s191 = scalar_select %p190, %s23, 0
        %s192 = smul.addr %s191, 8
        %s193 = scalar_lea.vmem %s0, %s192
        %v194 = vld [vmem:[%s165] sm:$0xff]
        %v195 = vld [vmem:[%s193] sm:$0xff]
        %197 = vset.pattern.permute.xlu0 0
        %198 = vperm.xlu0 %197, %v195
        %v199 = vpop.permute.xlu0 %198
        %v201 = vmul.f32 %v199, %v194
        %202 = vset.pattern.permute.xlu0 1
        %203 = vperm.xlu0 %202, %v195
        %v204 = vpop.permute.xlu0 %203
        %v206 = vadd.f32 %v201, %v204
        %v207 = vtanh.pop %v206
        %208 = vset.pattern.permute.xlu0 2
        %209 = vperm.xlu0 %208, %v195
        %v210 = vpop.permute.xlu0 %209
        %v212 = vmul.f32 %v210, %v207
        %v213 = vadd.f32 %v206, %v212
        %214 = vst [vmem:[%s189] sm:$0xff] %v213
        %s215 = sand.u32 %s95, 1
        %s216 = scalar_lea.sflag [#allocation4], %s215
        %s217 = sand.u32 %s95, 1
        %s218 = smul.addr %s217, 8
        %s219 = scalar_lea.vmem [#allocation5], %s218
        // Predicated region
        $region33: #{tpu_custom_call.1} parent=27 // pred_check
          %p220 = pneg %p105
        $region34: #{tpu_custom_call.1} parent=27 // pred_check_branch
          %222 = sbr.rel (%p220) target = $region36
        $region35: #{tpu_custom_call.1} parent=27 // pred_region
          %s224 = ssub.s32 128, 128
          %225 = vsyncadd %s216, %s224
          %s226 = smul.addr %s23, 2
          %s227 = sadd.s32 %s24, %s226
          %s228 = smul.addr %s227, 128
          %s229 = scalar_lea.hbm %s2, %s228
          %s231 = sshll.u32 %s219, 4
          %s232 = int_to_ptr.vmem [resolvable:$true] %s231
          %234 = dma.vmem_to_hbm [thread:$0]  %s232, 128, %s229, %s216
        $region36: #{tpu_custom_call.1} parent=27 // pred_fallthru
          _
      $region28: #{tpu_custom_call.1} parent=5 // pred_fallthru
        _
      %p235 = scmp.le.s32.totalorder 2, %s14
      // Predicated region
      $region37: #{tpu_custom_call.1} parent=5 // pred_check
        %p236 = pneg %p235
      $region38: #{tpu_custom_call.1} parent=5 // pred_check_branch
        %238 = sbr.rel (%p236) target = $region40
      $region39: #{tpu_custom_call.1} parent=5 // pred_region
        %s239 = ssub.s32 %s14, 2
        // Predicated region
        $region41: #{tpu_custom_call.1} parent=39 // pred_check
          %p240 = pneg %p111
        $region42: #{tpu_custom_call.1} parent=39 // pred_check_branch
          %242 = sbr.rel (%p240) target = $region44
        $region43: #{tpu_custom_call.1} parent=39 // pred_region
          %s243 = sand.u32 %s96, 1
          %s244 = scalar_lea.sflag [#allocation4], %s243
          %s245 = sand.u32 %s96, 1
          %s246 = smul.addr %s245, 8
          %s247 = scalar_lea.vmem [#allocation5], %s246
          %248 = dma.done %s244, 128
        $region44: #{tpu_custom_call.1} parent=39 // pred_fallthru
          _
      $region40: #{tpu_custom_call.1} parent=5 // pred_fallthru
        _
    $region6: #{tpu_custom_call.1} parent=1 // loop_footer
      %s18 = sadd.s32 1, %s14
    $region7: #{tpu_custom_call.1} parent=1 // loop_footer_branch
      %13 = sbr.rel target = $region3
    $region8: #{tpu_custom_call.1} parent=1 // loop_exit
      _
    %249 = vsyncpa [#allocation3], 1
    %s250 = scalar_lea.sflag [#allocation3], 1
    %251 = vsyncpa %s250, 1
    %252 = vsyncpa [#allocation4], 1
    %s253 = scalar_lea.sflag [#allocation4], 1
    %254 = vsyncpa %s253, 1

</llo_original>
